<compile_context>
chip_gen: v7x
topology: tpu7x:2x2x1
jax: 0.10.0
libtpu: 0.0.40
codegen_flags: <defaults>
</compile_context>

<pallas_src>
import jax
import jax.numpy as jnp
from jax.experimental import pallas as pl
from jax.experimental.pallas import tpu as pltpu


def _round_up(x, m):
    return ((x + m - 1) // m) * m


def _choose_tile(dim, align, cap):
    """Return (tile, padded_dim).

    If `dim` fits under `cap`, use the full dim as the block (no padding and no
    (8,128) divisibility requirement).  Otherwise pad only to a multiple of
    `align` and pick the largest multiple-of-`align` tile <= cap that divides
    the padded dim (avoids phantom rows/cols from padding to tile multiples).
    """
    if dim <= cap:
        return dim, dim
    padded = _round_up(dim, align)
    tile = cap - (cap % align)
    while padded % tile != 0:
        tile -= align
    return tile, padded


# Tile caps (see header): safe for v5e/v6e (128 MiB VMEM) and v7x (64 MiB, 2 TCs).
_TM_CAP, _TK_CAP, _TN_CAP = 256, 1024, 512


# ----------------------------- kernels -----------------------------

def _linear_kernel(x_ref, w_ref, b_ref, o_ref):
    """One (tm, tn) f32 output tile; K is the last ('arbitrary') grid axis.

    Bias is folded into the accumulator init; accumulation happens directly in
    the resident f32 output block (no scratch, no finalize copy).
    """
    @pl.when(pl.program_id(2) == 0)
    def _init():
        o_ref[...] = jnp.broadcast_to(b_ref[...], o_ref.shape).astype(o_ref.dtype)

    o_ref[...] += jnp.dot(x_ref[...], w_ref[...],
                          preferred_element_type=jnp.float32)


def _lstm_kernel(h_ref, c_ref, wh_ref, wc_ref, b_ref, o_ref):
    """LSTM path: two matmul accumulations into one output tile (no concat)."""
    @pl.when(pl.program_id(2) == 0)
    def _init():
        o_ref[...] = jnp.broadcast_to(b_ref[...], o_ref.shape).astype(o_ref.dtype)

    o_ref[...] += jnp.dot(h_ref[...], wh_ref[...],
                          preferred_element_type=jnp.float32)
    o_ref[...] += jnp.dot(c_ref[...], wc_ref[...],
                          preferred_element_type=jnp.float32)


# ------------------- one-time (init-time) parameter prep -------------------

def prepare_linear_params(w, b=None, *, compute_dtype=None):
    """Hoisted param prep for is_lstm=False: cast W once, bias -> (1, N) f32."""
    compute_dtype = compute_dtype or w.dtype
    n = w.shape[-1]
    if b is None:
        b = jnp.zeros((n,), jnp.float32)
    return w.astype(compute_dtype), jnp.reshape(b, (1, n)).astype(jnp.float32)


def prepare_lstm_params(wh, wc, bh=None, bc=None, *, compute_dtype=None):
    """Hoisted param prep for is_lstm=True: cast Wh/Wc once, fold bh+bc once."""
    compute_dtype = compute_dtype or wh.dtype
    n = wh.shape[-1]
    bh = jnp.zeros((n,), jnp.float32) if bh is None else jnp.reshape(bh, (-1,))
    bc = jnp.zeros((n,), jnp.float32) if bc is None else jnp.reshape(bc, (-1,))
    b = (bh.astype(jnp.float32) + bc.astype(jnp.float32)).reshape(1, n)
    return wh.astype(compute_dtype), wc.astype(compute_dtype), b


# ----------------------------- forward wrappers -----------------------------

def _tiles_and_grid(B, K, N):
    tm, Mp = _choose_tile(B, 8, _TM_CAP)
    tk, Kp = _choose_tile(K, 128, _TK_CAP)
    tn, Np = _choose_tile(N, 128, _TN_CAP)
    return (tm, tk, tn), (Mp, Kp, Np), (Mp // tm, Np // tn, Kp // tk)


def hidden2feat(x, w, b):
    """is_lstm=False path.  x: (1, B, D_in); w, b prepared via prepare_linear_params."""
    x2 = x.reshape(x.shape[-2], x.shape[-1])          # squeeze(0) -> (B, D_in)
    out_dtype = x2.dtype
    x2 = x2.astype(w.dtype)                           # match compute dtype (cheap: B x K)
    B, K = x2.shape
    N = w.shape[-1]
    (tm, tk, tn), (Mp, Kp, Np), grid = _tiles_and_grid(B, K, N)

    # Fallback padding only for dims that exceeded the tile caps (typical
    # Hidden2Feat shapes take the zero-copy path).
    xp = x2 if (Mp == B and Kp == K) else jnp.pad(x2, ((0, Mp - B), (0, Kp - K)))
    wp = w if (Kp == K and Np == N) else jnp.pad(w, ((0, Kp - K), (0, Np - N)))
    bp = b if Np == N else jnp.pad(b, ((0, 0), (0, Np - N)))

    out = pl.pallas_call(
        _linear_kernel,
        out_shape=jax.ShapeDtypeStruct((Mp, Np), jnp.float32),
        grid=grid,
        in_specs=[
            pl.BlockSpec((tm, tk), lambda i, j, k: (i, k)),   # activations
            pl.BlockSpec((tk, tn), lambda i, j, k: (k, j)),   # weights
            pl.BlockSpec((1, tn), lambda i, j, k: (0, j)),    # bias row
        ],
        out_specs=pl.BlockSpec((tm, tn), lambda i, j, k: (i, j)),
        compiler_params=pltpu.CompilerParams(
            dimension_semantics=("parallel", "parallel", "arbitrary")),
    )(xp, wp, bp)

    if not (Mp == B and Np == N):
        out = out[:B, :N]
    return out.astype(out_dtype)


def hidden2feat_lstm(h, c, wh, wc, b):
    """is_lstm=True path.  h, c: (1, B, D_in); wh, wc, b prepared via prepare_lstm_params."""
    h2 = h.reshape(h.shape[-2], h.shape[-1])          # squeeze(0) -> (B, D_in)
    c2 = c.reshape(c.shape[-2], c.shape[-1])
    out_dtype = h2.dtype
    h2 = h2.astype(wh.dtype)
    c2 = c2.astype(wc.dtype)
    B, K = h2.shape
    N = wh.shape[-1]
    (tm, tk, tn), (Mp, Kp, Np), grid = _tiles_and_grid(B, K, N)

    def pad_act(a):
        return a if (Mp == B and Kp == K) else jnp.pad(a, ((0, Mp - B), (0, Kp - K)))

    def pad_w(a):
        return a if (Kp == K and Np == N) else jnp.pad(a, ((0, Kp - K), (0, Np - N)))

    hp, cp = pad_act(h2), pad_act(c2)
    whp, wcp = pad_w(wh), pad_w(wc)
    bp = b if Np == N else jnp.pad(b, ((0, 0), (0, Np - N)))

    out = pl.pallas_call(
        _lstm_kernel,
        out_shape=jax.ShapeDtypeStruct((Mp, Np), jnp.float32),
        grid=grid,
        in_specs=[
            pl.BlockSpec((tm, tk), lambda i, j, k: (i, k)),   # h
            pl.BlockSpec((tm, tk), lambda i, j, k: (i, k)),   # c
            pl.BlockSpec((tk, tn), lambda i, j, k: (k, j)),   # Wh
            pl.BlockSpec((tk, tn), lambda i, j, k: (k, j)),   # Wc
            pl.BlockSpec((1, tn), lambda i, j, k: (0, j)),    # fused bias (bh + bc)
        ],
        out_specs=pl.BlockSpec((tm, tn), lambda i, j, k: (i, j)),
        compiler_params=pltpu.CompilerParams(
            dimension_semantics=("parallel", "parallel", "arbitrary")),
    )(hp, cp, whp, wcp, bp)

    if not (Mp == B and Np == N):
        out = out[:B, :N]
    return out.astype(out_dtype)


# ----------------------------- demo -----------------------------

if __name__ == "__main__":
    B, D_in, D_out = 2, 32, 16
    key = jax.random.PRNGKey(0)
    k_h, k_c, k_wh, k_wc, k_bh, k_bc, k_x, k_w, k_b = jax.random.split(key, 9)

    # Parameters kept pre-transposed as (D_in, D_out) so the kernel computes x @ W.
    bound = 1.0 / (D_in ** 0.5)
    wh = jax.random.uniform(k_wh, (D_in, D_out), jnp.float32, -bound, bound)
    wc = jax.random.uniform(k_wc, (D_in, D_out), jnp.float32, -bound, bound)
    bh = jax.random.uniform(k_bh, (1, D_out), jnp.float32, -bound, bound)
    bc = jax.random.uniform(k_bc, (1, D_out), jnp.float32, -bound, bound)
    w = jax.random.uniform(k_w, (D_in, D_out), jnp.float32, -bound, bound)
    b = jax.random.uniform(k_b, (1, D_out), jnp.float32, -bound, bound)

    # One-time (init-time) param prep — hoisted out of the forward path.
    # For production use compute_dtype=jnp.bfloat16 here (f32 accumulation kept);
    # the demo stays f32 to preserve the 1e-5 reference check.
    whp, wcp, b_lstm = prepare_lstm_params(wh, wc, bh, bc)
    wp, bp = prepare_linear_params(w, b)

    # Inputs as produced by an RNN: (num_layers=1, B, D_in)
    h = jax.random.normal(k_h, (1, B, D_in), jnp.float32)
    c = jax.random.normal(k_c, (1, B, D_in), jnp.float32)
    x = jax.random.normal(k_x, (1, B, D_in), jnp.float32)

    # LSTM path (two in-kernel matmul accumulations, single fused bias)
    out_lstm = jax.block_until_ready(hidden2feat_lstm(h, c, whp, wcp, b_lstm))
    ref_lstm = (h[0] @ wh + bh) + (c[0] @ wc + bc)
    assert out_lstm.shape == (B, D_out)
    assert jnp.allclose(out_lstm, ref_lstm, atol=1e-5, rtol=1e-5)

    # non-LSTM path
    out_lin = jax.block_until_ready(hidden2feat(x, wp, bp))
    ref_lin = x[0] @ w + b
    assert out_lin.shape == (B, D_out)
    assert jnp.allclose(out_lin, ref_lin, atol=1e-5, rtol=1e-5)

    print("KERNEL_OK")
</pallas_src>

<mosaic_0001>
module attributes {stable_mosaic.version = 11 : i64} {
  func.func @_lstm_kernel(%arg0: i32, %arg1: i32, %arg2: i32, %arg3: memref<2x32xf32, #tpu.memory_space<vmem>>, %arg4: memref<2x32xf32, #tpu.memory_space<vmem>>, %arg5: memref<32x16xf32, #tpu.memory_space<vmem>>, %arg6: memref<32x16xf32, #tpu.memory_space<vmem>>, %arg7: memref<1x16xf32, #tpu.memory_space<vmem>>, %arg8: memref<2x16xf32, #tpu.memory_space<vmem>>) attributes {dimension_semantics = [#tpu.dimension_semantics<parallel>, #tpu.dimension_semantics<parallel>, #tpu.dimension_semantics<arbitrary>], iteration_bounds = array<i64: 1, 1, 1>, scalar_prefetch = 0 : i64, scratch_operands = 0 : i64, tpu.core_type = #tpu.core_type<tc>, window_params = [{transform_indices = @transform_0, window_bounds = array<i64: 2, 32>}, {transform_indices = @transform_1, window_bounds = array<i64: 2, 32>}, {transform_indices = @transform_2, window_bounds = array<i64: 32, 16>}, {transform_indices = @transform_3, window_bounds = array<i64: 32, 16>}, {transform_indices = @transform_4, window_bounds = array<i64: 1, 16>}, {transform_indices = @transform_5, window_bounds = array<i64: 2, 16>}]} {
    %c0_i32 = arith.constant 0 : i32
    %0 = arith.cmpi eq, %arg2, %c0_i32 : i32
    %1 = arith.extui %0 : i1 to i32
    %c0_i32_0 = arith.constant 0 : i32
    %2 = arith.cmpi ne, %1, %c0_i32_0 : i32
    scf.if %2 {
      %c0_17 = arith.constant 0 : index
      %c0_18 = arith.constant 0 : index
      %15 = vector.load %arg7[%c0_17, %c0_18] : memref<1x16xf32, #tpu.memory_space<vmem>>, vector<1x16xf32>
      %16 = vector.shape_cast %15 : vector<1x16xf32> to vector<1x16xf32>
      %17 = vector.broadcast %16 : vector<1x16xf32> to vector<2x16xf32>
      %c0_19 = arith.constant 0 : index
      %c0_20 = arith.constant 0 : index
      %18 = vector.load %arg8[%c0_19, %c0_20] : memref<2x16xf32, #tpu.memory_space<vmem>>, vector<2x16xf32>
      tpu.vector_store %arg8[%c0_19, %c0_20], %17 {strides = array<i32>} : memref<2x16xf32, #tpu.memory_space<vmem>>, vector<2x16xf32>,
    } else {
    }
    %c0 = arith.constant 0 : index
    %c0_1 = arith.constant 0 : index
    %3 = vector.load %arg8[%c0, %c0_1] : memref<2x16xf32, #tpu.memory_space<vmem>>, vector<2x16xf32>
    %c0_2 = arith.constant 0 : index
    %c0_3 = arith.constant 0 : index
    %4 = vector.load %arg3[%c0_2, %c0_3] : memref<2x32xf32, #tpu.memory_space<vmem>>, vector<2x32xf32>
    %c0_4 = arith.constant 0 : index
    %c0_5 = arith.constant 0 : index
    %5 = vector.load %arg5[%c0_4, %c0_5] : memref<32x16xf32, #tpu.memory_space<vmem>>, vector<32x16xf32>
    %cst = arith.constant dense<0.000000e+00> : vector<2x16xf32>
    %6 = tpu.matmul %4, %5, %cst {dimension_numbers = #tpu.dot_dimension_numbers<[1], [0], [0], [1], [0, 0, 1, 1], [], []>} : vector<2x32xf32>, vector<32x16xf32>, vector<2x16xf32> -> vector<2x16xf32>
    %7 = arith.addf %3, %6 : vector<2x16xf32>
    %c0_6 = arith.constant 0 : index
    %c0_7 = arith.constant 0 : index
    %8 = vector.load %arg8[%c0_6, %c0_7] : memref<2x16xf32, #tpu.memory_space<vmem>>, vector<2x16xf32>
    tpu.vector_store %arg8[%c0_6, %c0_7], %7 {strides = array<i32>} : memref<2x16xf32, #tpu.memory_space<vmem>>, vector<2x16xf32>,
    %c0_8 = arith.constant 0 : index
    %c0_9 = arith.constant 0 : index
    %9 = vector.load %arg8[%c0_8, %c0_9] : memref<2x16xf32, #tpu.memory_space<vmem>>, vector<2x16xf32>
    %c0_10 = arith.constant 0 : index
    %c0_11 = arith.constant 0 : index
    %10 = vector.load %arg4[%c0_10, %c0_11] : memref<2x32xf32, #tpu.memory_space<vmem>>, vector<2x32xf32>
    %c0_12 = arith.constant 0 : index
    %c0_13 = arith.constant 0 : index
    %11 = vector.load %arg6[%c0_12, %c0_13] : memref<32x16xf32, #tpu.memory_space<vmem>>, vector<32x16xf32>
    %cst_14 = arith.constant dense<0.000000e+00> : vector<2x16xf32>
    %12 = tpu.matmul %10, %11, %cst_14 {dimension_numbers = #tpu.dot_dimension_numbers<[1], [0], [0], [1], [0, 0, 1, 1], [], []>} : vector<2x32xf32>, vector<32x16xf32>, vector<2x16xf32> -> vector<2x16xf32>
    %13 = arith.addf %9, %12 : vector<2x16xf32>
    %c0_15 = arith.constant 0 : index
    %c0_16 = arith.constant 0 : index
    %14 = vector.load %arg8[%c0_15, %c0_16] : memref<2x16xf32, #tpu.memory_space<vmem>>, vector<2x16xf32>
    tpu.vector_store %arg8[%c0_15, %c0_16], %13 {strides = array<i32>} : memref<2x16xf32, #tpu.memory_space<vmem>>, vector<2x16xf32>,
    return
  }
  func.func @transform_0(%arg0: i32, %arg1: i32, %arg2: i32) -> (i32, i32) {
    %c0_i32 = arith.constant 0 : i32
    return %arg0, %arg2 : i32, i32
  }
  func.func @transform_1(%arg0: i32, %arg1: i32, %arg2: i32) -> (i32, i32) {
    %c0_i32 = arith.constant 0 : i32
    return %arg0, %arg2 : i32, i32
  }
  func.func @transform_2(%arg0: i32, %arg1: i32, %arg2: i32) -> (i32, i32) {
    %c0_i32 = arith.constant 0 : i32
    return %arg2, %arg1 : i32, i32
  }
  func.func @transform_3(%arg0: i32, %arg1: i32, %arg2: i32) -> (i32, i32) {
    %c0_i32 = arith.constant 0 : i32
    return %arg2, %arg1 : i32, i32
  }
  func.func @transform_4(%arg0: i32, %arg1: i32, %arg2: i32) -> (i32, i32) {
    %c0_i32 = arith.constant 0 : i32
    %c0_i32_0 = arith.constant 0 : i32
    return %c0_i32, %arg1 : i32, i32
  }
  func.func @transform_5(%arg0: i32, %arg1: i32, %arg2: i32) -> (i32, i32) {
    %c0_i32 = arith.constant 0 : i32
    return %arg0, %arg1 : i32, i32
  }
}

</mosaic_0001>

<llo_original>
// kernel: tpu_custom_call.1
$region0: #{tpu_custom_call.1}
  #allocation0 [shape = 'u32[]', space=smem, size = 0x4, offset = 0x4, fixed_abs, tag = 'smem constant byte address 0x4 - core index']
  #allocation1 [shape = 'u32[144,128]{1,0:T(1,128)}', space=vmem, size = 0x12000, scoped, tag = 'internal scratch']
  %s0 = inlined_call_operand.vmem [shape: f32[2,32], index: 0, kind: input, shape index: {}]
  %s1 = inlined_call_operand.vmem [shape: f32[2,32], index: 1, kind: input, shape index: {}]
  %s2 = inlined_call_operand.vmem [shape: f32[32,16], index: 2, kind: input, shape index: {}]
  %s3 = inlined_call_operand.vmem [shape: f32[32,16], index: 3, kind: input, shape index: {}]
  %s4 = inlined_call_operand.vmem [shape: f32[1,16], index: 4, kind: input, shape index: {}]
  %s5 = inlined_call_operand.hbm [shape: f32[2,16], index: 5, kind: output, shape index: {}]
  %s6 = sld [smem:[#allocation0]]
  $region34: #{tpu_custom_call.1} parent=0
    _
  %s8 = ssub.s32 1, %s6
  %s9 = scalar_select 0, %s8, %s6
  $region1: #{tpu_custom_call.1} parent=0
    #allocation2 [shape = 'u8[1024]{0}', space=vmem, size = 0x400, scoped, tag = 'output window, operand 0, single buffered']
    #allocation3 [shape = 's32[1]{0}', space=sflag, size = 0x4, scoped, tag = 'scoped memory for tpu_custom_call.1']
    %10 = vsyncpa [#allocation3], 0
    // Predicated region
    $region2: #{tpu_custom_call.1} parent=1 // pred_check
      _
    $region3: #{tpu_custom_call.1} parent=1 // pred_check_branch
      %12 = sbr.rel (0) target = $region5
    $region4: #{tpu_custom_call.1} parent=1 // pred_region
      _
    $region5: #{tpu_custom_call.1} parent=1 // pred_fallthru
      _
    // Predicated region
    $region6: #{tpu_custom_call.1} parent=1 // pred_check
      _
    $region7: #{tpu_custom_call.1} parent=1 // pred_check_branch
      %14 = sbr.rel (0) target = $region9
    $region8: #{tpu_custom_call.1} parent=1 // pred_region
      _
    $region9: #{tpu_custom_call.1} parent=1 // pred_fallthru
      _
    // Predicated region
    $region10: #{tpu_custom_call.1} parent=1 // pred_check
      _
    $region11: #{tpu_custom_call.1} parent=1 // pred_check_branch
      %16 = sbr.rel (0) target = $region13
    $region12: #{tpu_custom_call.1} parent=1 // pred_region
      _
    $region13: #{tpu_custom_call.1} parent=1 // pred_fallthru
      _
    // Predicated region
    $region14: #{tpu_custom_call.1} parent=1 // pred_check
      _
    $region15: #{tpu_custom_call.1} parent=1 // pred_check_branch
      %18 = sbr.rel (0) target = $region17
    $region16: #{tpu_custom_call.1} parent=1 // pred_region
      _
    $region17: #{tpu_custom_call.1} parent=1 // pred_fallthru
      _
    // Predicated region
    $region18: #{tpu_custom_call.1} parent=1 // pred_check
      _
    $region19: #{tpu_custom_call.1} parent=1 // pred_check_branch
      %20 = sbr.rel (0) target = $region21
    $region20: #{tpu_custom_call.1} parent=1 // pred_region
      _
    $region21: #{tpu_custom_call.1} parent=1 // pred_fallthru
      _
    %p21 = scmp.eq.s32.totalorder 0, 0
    // Predicated region
    $region22: #{tpu_custom_call.1} parent=1 // pred_check
      %p22 = pneg %p21
    $region23: #{tpu_custom_call.1} parent=1 // pred_check_branch
      %24 = sbr.rel (%p22) target = $region25
    $region24: #{tpu_custom_call.1} parent=1 // pred_region
      %v25 = vld [vmem:[%s4] sm:$0x1]
      %v27 = vlaneseq
      %v28 = vshrl.u32 %v27, 7
      %v29 = vsub.s32 0, %v28
      %v30 = vrot.slane %v25, %v29
      %vm32 = vcmask 123904
      %33 = vst.msk [vmem:[#allocation2] sm:$0x3] %vm32, %v30
    $region25: #{tpu_custom_call.1} parent=1 // pred_fallthru
      _
    %v34 = vld [vmem:[#allocation2] sm:$0x3]
    %v35 = vld [vmem:[%s0] sm:$0x3]
    %v36 = vld [vmem:[%s2] sm:$0xff]
    %v37 = vld [vmem:[%s2 + $0x8] sm:$0xff]
    %v38 = vld [vmem:[%s2 + $0x10] sm:$0xff]
    %v39 = vld [vmem:[%s2 + $0x18] sm:$0xff]
    %vm40 = vcmask 261120
    %v42 = vsel %vm40, %v35, 0
    %44 = vmatprep.subr.mxu0 0.0
    %45 = vmatpush1.msra.mxu0 %v36
    %46 = vmatprep.subr.mxu0 0.0
    %47 = vmatpush1.msra.mxu0 %v37
    %48 = vmatprep.subr.mxu0 0.0
    %49 = vmatpush1.msra.mxu0 %v38
    %50 = vmatprep.subr.mxu0 0.0
    %51 = vmatpush1.msra.mxu0 %v39
    %52 = vmatprep.subr.mxu0 0.0
    %53 = vmatpush1.msra.mxu0 0.0
    %54 = vmatprep.subr.mxu0 0.0
    %55 = vmatpush1.msra.mxu0 0.0
    %56 = vmatprep.subr.mxu0 0.0
    %57 = vmatpush1.msra.mxu0 0.0
    %58 = vmatprep.subr.mxu0 0.0
    %59 = vmatpush1.msra.mxu0 0.0
    %60 = vmatprep.subr.mxu0 0.0
    %61 = vmatpush1.msra.mxu0 0.0
    %62 = vmatprep.subr.mxu0 0.0
    %63 = vmatpush1.msra.mxu0 0.0
    %64 = vmatprep.subr.mxu0 0.0
    %65 = vmatpush1.msra.mxu0 0.0
    %66 = vmatprep.subr.mxu0 0.0
    %67 = vmatpush1.msra.mxu0 0.0
    %68 = vmatprep.subr.mxu0 0.0
    %69 = vmatpush1.msra.mxu0 0.0
    %70 = vmatprep.subr.mxu0 0.0
    %71 = vmatpush1.msra.mxu0 0.0
    %72 = vmatprep.subr.mxu0 0.0
    %73 = vmatpush1.msra.mxu0 0.0
    %74 = vmatprep.subr.mxu0 0.0
    %75 = vmatpush1.msra.mxu0 0.0
    %76 = vmatprep.subr.mxu0 0.0
    %77 = vmatpush1.msra.mxu0 0.0
    %78 = vmatprep.subr.mxu0 0.0
    %79 = vmatpush1.msra.mxu0 0.0
    %80 = vmatprep.subr.mxu0 0.0
    %81 = vmatpush1.msra.mxu0 0.0
    %82 = vmatprep.subr.mxu0 0.0
    %83 = vmatpush1.msra.mxu0 0.0
    %84 = vmatprep.subr.mxu0 0.0
    %85 = vmatpush1.msra.mxu0 0.0
    %86 = vmatprep.subr.mxu0 0.0
    %87 = vmatpush1.msra.mxu0 0.0
    %88 = vmatprep.subr.mxu0 0.0
    %89 = vmatpush1.msra.mxu0 0.0
    %90 = vmatprep.subr.mxu0 0.0
    %91 = vmatpush1.msra.mxu0 0.0
    %92 = vmatprep.subr.mxu0 0.0
    %93 = vmatpush1.msra.mxu0 0.0
    %94 = vmatprep.subr.mxu0 0.0
    %95 = vmatpush1.msra.mxu0 0.0
    %96 = vmatprep.subr.mxu0 0.0
    %97 = vmatpush1.msra.mxu0 0.0
    %98 = vmatprep.subr.mxu0 0.0
    %99 = vmatpush1.msra.mxu0 0.0
    %100 = vmatprep.subr.mxu0 0.0
    %101 = vmatpush1.msra.mxu0 0.0
    %102 = vmatprep.subr.mxu0 0.0
    %103 = vmatpush1.msra.mxu0 0.0
    %104 = vmatprep.subr.mxu0 0.0
    %105 = vmatpush1.msra.mxu0 0.0
    %106 = vmatprep.subr.mxu0 0.0
    %107 = vmatpush1.msra.mxu0 0.0
    %108 = vmatprep.mubr.f32.mxu0 0.0
    %109 = vmatmul.mubr.f32.gmra.mrb[0].mxu0 %v42
    %v110 = vpop.f32.mrb[0].mxu0
    %v111 = vadd.f32 0.0, %v110
    %v112 = vpop.f32.mrb[0].mxu0
    %113 = vdwg.mxu0
    %v114 = vadd.f32 %v34, %v111
    %vm115 = vcmask 123904
    %116 = vst.msk [vmem:[#allocation2] sm:$0x3] %vm115, %v114
    %v117 = vld [vmem:[#allocation2] sm:$0x3]
    %v118 = vld [vmem:[%s1] sm:$0x3]
    %v119 = vld [vmem:[%s3] sm:$0xff]
    %v120 = vld [vmem:[%s3 + $0x8] sm:$0xff]
    %v121 = vld [vmem:[%s3 + $0x10] sm:$0xff]
    %v122 = vld [vmem:[%s3 + $0x18] sm:$0xff]
    %v124 = vsel %vm40, %v118, 0
    %126 = vmatprep.subr.mxu0 0.0
    %127 = vmatpush1.msra.mxu0 %v119
    %128 = vmatprep.subr.mxu0 0.0
    %129 = vmatpush1.msra.mxu0 %v120
    %130 = vmatprep.subr.mxu0 0.0
    %131 = vmatpush1.msra.mxu0 %v121
    %132 = vmatprep.subr.mxu0 0.0
    %133 = vmatpush1.msra.mxu0 %v122
    %134 = vmatprep.subr.mxu0 0.0
    %135 = vmatpush1.msra.mxu0 0.0
    %136 = vmatprep.subr.mxu0 0.0
    %137 = vmatpush1.msra.mxu0 0.0
    %138 = vmatprep.subr.mxu0 0.0
    %139 = vmatpush1.msra.mxu0 0.0
    %140 = vmatprep.subr.mxu0 0.0
    %141 = vmatpush1.msra.mxu0 0.0
    %142 = vmatprep.subr.mxu0 0.0
    %143 = vmatpush1.msra.mxu0 0.0
    %144 = vmatprep.subr.mxu0 0.0
    %145 = vmatpush1.msra.mxu0 0.0
    %146 = vmatprep.subr.mxu0 0.0
    %147 = vmatpush1.msra.mxu0 0.0
    %148 = vmatprep.subr.mxu0 0.0
    %149 = vmatpush1.msra.mxu0 0.0
    %150 = vmatprep.subr.mxu0 0.0
    %151 = vmatpush1.msra.mxu0 0.0
    %152 = vmatprep.subr.mxu0 0.0
    %153 = vmatpush1.msra.mxu0 0.0
    %154 = vmatprep.subr.mxu0 0.0
    %155 = vmatpush1.msra.mxu0 0.0
    %156 = vmatprep.subr.mxu0 0.0
    %157 = vmatpush1.msra.mxu0 0.0
    %158 = vmatprep.subr.mxu0 0.0
    %159 = vmatpush1.msra.mxu0 0.0
    %160 = vmatprep.subr.mxu0 0.0
    %161 = vmatpush1.msra.mxu0 0.0
    %162 = vmatprep.subr.mxu0 0.0
    %163 = vmatpush1.msra.mxu0 0.0
    %164 = vmatprep.subr.mxu0 0.0
    %165 = vmatpush1.msra.mxu0 0.0
    %166 = vmatprep.subr.mxu0 0.0
    %167 = vmatpush1.msra.mxu0 0.0
    %168 = vmatprep.subr.mxu0 0.0
    %169 = vmatpush1.msra.mxu0 0.0
    %170 = vmatprep.subr.mxu0 0.0
    %171 = vmatpush1.msra.mxu0 0.0
    %172 = vmatprep.subr.mxu0 0.0
    %173 = vmatpush1.msra.mxu0 0.0
    %174 = vmatprep.subr.mxu0 0.0
    %175 = vmatpush1.msra.mxu0 0.0
    %176 = vmatprep.subr.mxu0 0.0
    %177 = vmatpush1.msra.mxu0 0.0
    %178 = vmatprep.subr.mxu0 0.0
    %179 = vmatpush1.msra.mxu0 0.0
    %180 = vmatprep.subr.mxu0 0.0
    %181 = vmatpush1.msra.mxu0 0.0
    %182 = vmatprep.subr.mxu0 0.0
    %183 = vmatpush1.msra.mxu0 0.0
    %184 = vmatprep.subr.mxu0 0.0
    %185 = vmatpush1.msra.mxu0 0.0
    %186 = vmatprep.subr.mxu0 0.0
    %187 = vmatpush1.msra.mxu0 0.0
    %188 = vmatprep.subr.mxu0 0.0
    %189 = vmatpush1.msra.mxu0 0.0
    %190 = vmatprep.mubr.f32.mxu0 0.0
    %191 = vmatmul.mubr.f32.gmra.mrb[0].mxu0 %v124
    %v192 = vpop.f32.mrb[0].mxu0
    %v193 = vadd.f32 0.0, %v192
    %v194 = vpop.f32.mrb[0].mxu0
    %195 = vdwg.mxu0
    %v196 = vadd.f32 %v117, %v193
    %197 = vst.msk [vmem:[#allocation2] sm:$0x3] %vm115, %v196
    // Predicated region
    $region26: #{tpu_custom_call.1} parent=1 // pred_check
      _
    $region27: #{tpu_custom_call.1} parent=1 // pred_check_branch
      %199 = sbr.rel (0) target = $region29
    $region28: #{tpu_custom_call.1} parent=1 // pred_region
      %s201 = ssub.s32 32, 32
      %202 = vsyncadd [#allocation3], %s201
      %s204 = sshll.u32 [#allocation2], 4
      %s205 = int_to_ptr.vmem [resolvable:$true] %s204
      %207 = dma.vmem_to_hbm [thread:$0]  %s205, 32, %s5, [#allocation3]
    $region29: #{tpu_custom_call.1} parent=1 // pred_fallthru
      _
    // Predicated region
    $region30: #{tpu_custom_call.1} parent=1 // pred_check
      _
    $region31: #{tpu_custom_call.1} parent=1 // pred_check_branch
      %209 = sbr.rel (0) target = $region33
    $region32: #{tpu_custom_call.1} parent=1 // pred_region
      %210 = dma.done [#allocation3], 32
    $region33: #{tpu_custom_call.1} parent=1 // pred_fallthru
      _
    %211 = vsyncpa [#allocation3], 1

</llo_original>
